<compile_context>
chip_gen: v5e
topology: v5e:2x2
jax: 0.10.0
libtpu: 0.0.40
codegen_flags: <defaults>
</compile_context>

<pallas_src>
import functools

import jax
import jax.numpy as jnp
from jax.experimental import pallas as pl
from jax.experimental.pallas import tpu as pltpu

_LANE = 128
_BLOCK_BUDGET_BYTES = 2 * 1024 * 1024  # ~2 MiB per x block
_VMEM_LIMIT_BYTES = 32 * 1024 * 1024   # safe on v5e / v6e / v7x


def _make_pool_excite_kernel(inv_hw):
    """Pass 1: spatial-sum accumulation + tiny excitation MLP."""

    def kernel(x_ref, w1_ref, w2_ref, s_ref, acc_ref):
        # x_ref: (Bn, C, T_HW) native dtype; w1: (Cr, C); w2: (C, Cr)
        # s_ref: (Bn, C, 1) f32 output; acc_ref: (Bn, C) f32 scratch
        h = pl.program_id(1)

        @pl.when(h == 0)
        def _():
            acc_ref[...] = jnp.zeros_like(acc_ref)

        # accumulate spatial sum in f32 (lane reduction on XLU)
        acc_ref[...] += jnp.sum(x_ref[...].astype(jnp.float32), axis=-1)

        @pl.when(h == pl.num_programs(1) - 1)
        def _():
            pooled = acc_ref[...] * inv_hw                       # (Bn, C) f32
            w1 = w1_ref[...].astype(jnp.float32)                 # (Cr, C)
            w2 = w2_ref[...].astype(jnp.float32)                 # (C, Cr)
            # excitation as VPU broadcast-mul + lane reduce (no MXU matvec)
            hid = jnp.sum(pooled[:, None, :] * w1[None, :, :], axis=-1)  # (Bn, Cr)
            hid = jnp.maximum(hid, 0.0)
            logits = jnp.sum(hid[:, None, :] * w2[None, :, :], axis=-1)  # (Bn, C)
            s_ref[...] = jax.nn.sigmoid(logits)[:, :, None]

    return kernel


def _scale_kernel(x_ref, s_ref, o_ref):
    # x_ref / o_ref: (Bn, C, T_HW) native dtype; s_ref: (Bn, C, 1) f32
    # Keep the multiply in the input dtype: no full-tile upcast.
    o_ref[...] = x_ref[...] * s_ref[...].astype(o_ref.dtype)


def _round_up(v, m):
    return -(-v // m) * m


def channel_fusion_forward(x, w1, w2):
    """x: (N, C, H, W) NCHW, same as the PyTorch module.
    w1: (Cr, C) squeeze 1x1-conv weight (bias=False)
    w2: (C, Cr) excite 1x1-conv weight (bias=False)
    returns: (N, C, H, W)
    """
    N, C, H, W = x.shape
    Cr = w1.shape[0]
    HW = H * W
    itemsize = jnp.dtype(x.dtype).itemsize

    # ---- tiling: lane-dense HW tiles, batch blocks sized near the budget ----
    hw_pad0 = _round_up(HW, _LANE)
    max_t = max(_LANE, (_BLOCK_BUDGET_BYTES // max(1, C * itemsize)) // _LANE * _LANE)
    t_hw = min(hw_pad0, max_t)
    hw_pad = _round_up(HW, t_hw)

    bn = 1
    for cand in range(N, 0, -1):
        if N % cand == 0 and cand * C * t_hw * itemsize <= _BLOCK_BUDGET_BYTES:
            bn = cand
            break

    x2 = x.reshape(N, C, HW)
    if hw_pad != HW:
        # zero padding: does not perturb the spatial sum; sliced off at the end
        x2 = jnp.pad(x2, ((0, 0), (0, 0), (0, hw_pad - HW)))

    grid = (N // bn, hw_pad // t_hw)
    x_spec = pl.BlockSpec((bn, C, t_hw), lambda n, h: (n, 0, h))
    s_spec = pl.BlockSpec((bn, C, 1), lambda n, h: (n, 0, 0))

    # ---- pass 1: pooled mean + excitation -> per-(n, c) scale (f32) ----
    s = pl.pallas_call(
        _make_pool_excite_kernel(1.0 / float(HW)),
        out_shape=jax.ShapeDtypeStruct((N, C, 1), jnp.float32),
        grid_spec=pltpu.PrefetchScalarGridSpec(
            num_scalar_prefetch=0,
            grid=grid,
            in_specs=[
                x_spec,
                pl.BlockSpec((Cr, C), lambda n, h: (0, 0)),
                pl.BlockSpec((C, Cr), lambda n, h: (0, 0)),
            ],
            out_specs=s_spec,
            scratch_shapes=[pltpu.VMEM((bn, C), jnp.float32)],
        ),
        compiler_params=pltpu.CompilerParams(
            dimension_semantics=("parallel", "arbitrary"),
            vmem_limit_bytes=_VMEM_LIMIT_BYTES,
        ),
    )(x2, w1, w2)

    # ---- pass 2: lane-dense elementwise scale, fully parallel grid ----
    out = pl.pallas_call(
        _scale_kernel,
        out_shape=jax.ShapeDtypeStruct((N, C, hw_pad), x.dtype),
        grid_spec=pltpu.PrefetchScalarGridSpec(
            num_scalar_prefetch=0,
            grid=grid,
            in_specs=[x_spec, s_spec],
            out_specs=x_spec,
        ),
        compiler_params=pltpu.CompilerParams(
            dimension_semantics=("parallel", "parallel"),
            vmem_limit_bytes=_VMEM_LIMIT_BYTES,
        ),
    )(x2, s)

    if hw_pad != HW:
        out = out[:, :, :HW]
    return out.reshape(N, C, H, W)


def make_params(in_channels, reduction_ratio=16, key=jax.random.PRNGKey(0)):
    # mirror the reduced-channel logic from the PyTorch __init__
    if in_channels <= reduction_ratio:
        reduced = in_channels // 2 if in_channels > 1 else 1
    else:
        reduced = in_channels // reduction_ratio
    if reduced < 1:
        reduced = 1
    k1, k2 = jax.random.split(key)
    # deterministic synthetic init (1x1 conv weights squeezed to 2-D)
    w1 = jax.random.normal(k1, (reduced, in_channels), jnp.float32) * (
        1.0 / jnp.sqrt(in_channels))
    w2 = jax.random.normal(k2, (in_channels, reduced), jnp.float32) * (
        1.0 / jnp.sqrt(reduced))
    return w1, w2


def _reference(x, w1, w2):
    pooled = jnp.mean(x, axis=(2, 3))                      # (N, C)
    h = jnp.maximum(pooled @ w1.T, 0.0)                    # (N, Cr)
    s = jax.nn.sigmoid(h @ w2.T)                           # (N, C)
    return x * s[:, :, None, None]


if __name__ == "__main__":
    N, C, H, W = 2, 4, 16, 16
    key = jax.random.PRNGKey(0)
    kx, kp = jax.random.split(key)
    x = jax.random.normal(kx, (N, C, H, W), jnp.float32)
    w1, w2 = make_params(C, reduction_ratio=16, key=kp)

    out = channel_fusion_forward(x, w1, w2)
    out = jax.block_until_ready(out)

    ref = _reference(x, w1, w2)
    assert out.shape == (N, C, H, W)
    assert jnp.allclose(out, ref, atol=1e-5, rtol=1e-5), "mismatch vs reference"
    print("KERNEL_OK")
</pallas_src>

<mosaic_0001>
module attributes {stable_mosaic.version = 11 : i64} {
  func.func @kernel(%arg0: i32, %arg1: i32, %arg2: memref<2x4x256xf32, #tpu.memory_space<vmem>>, %arg3: memref<2x4xf32, #tpu.memory_space<vmem>>, %arg4: memref<4x2xf32, #tpu.memory_space<vmem>>, %arg5: memref<2x4x1xf32, #tpu.memory_space<vmem>>, %arg6: memref<2x4xf32, #tpu.memory_space<vmem>>) attributes {dimension_semantics = [#tpu.dimension_semantics<parallel>, #tpu.dimension_semantics<arbitrary>], iteration_bounds = array<i64: 1, 1>, scalar_prefetch = 0 : i64, scratch_operands = 1 : i64, tpu.core_type = #tpu.core_type<tc>, window_params = [{transform_indices = @transform_0, window_bounds = array<i64: 2, 4, 256>}, {pipeline_mode = #tpu.pipeline_mode<synchronous>, transform_indices = @transform_1, window_bounds = array<i64: 2, 4>}, {pipeline_mode = #tpu.pipeline_mode<synchronous>, transform_indices = @transform_2, window_bounds = array<i64: 4, 2>}, {transform_indices = @transform_3, window_bounds = array<i64: 2, 4, 1>}]} {
    %c0_i32 = arith.constant 0 : i32
    %0 = arith.cmpi eq, %arg1, %c0_i32 : i32
    %1 = arith.extui %0 : i1 to i32
    %c0_i32_0 = arith.constant 0 : i32
    %2 = arith.cmpi ne, %1, %c0_i32_0 : i32
    scf.if %2 {
      %cst_9 = arith.constant 0.000000e+00 : f32
      %11 = vector.broadcast %cst_9 : f32 to vector<2x4xf32>
      %c0_10 = arith.constant 0 : index
      %c0_11 = arith.constant 0 : index
      %12 = vector.load %arg6[%c0_10, %c0_11] : memref<2x4xf32, #tpu.memory_space<vmem>>, vector<2x4xf32>
      tpu.vector_store %arg6[%c0_10, %c0_11], %11 {strides = array<i32>} : memref<2x4xf32, #tpu.memory_space<vmem>>, vector<2x4xf32>,
    } else {
    }
    %c0 = arith.constant 0 : index
    %c0_1 = arith.constant 0 : index
    %3 = vector.load %arg6[%c0, %c0_1] : memref<2x4xf32, #tpu.memory_space<vmem>>, vector<2x4xf32>
    %c0_2 = arith.constant 0 : index
    %c0_3 = arith.constant 0 : index
    %c0_4 = arith.constant 0 : index
    %4 = vector.load %arg2[%c0_2, %c0_3, %c0_4] : memref<2x4x256xf32, #tpu.memory_space<vmem>>, vector<2x4x256xf32>
    %cst = arith.constant dense<0.000000e+00> : vector<2x4xf32>
    %5 = vector.multi_reduction <add>, %4, %cst [2] : vector<2x4x256xf32> to vector<2x4xf32>
    %6 = arith.addf %3, %5 : vector<2x4xf32>
    %c0_5 = arith.constant 0 : index
    %c0_6 = arith.constant 0 : index
    %7 = vector.load %arg6[%c0_5, %c0_6] : memref<2x4xf32, #tpu.memory_space<vmem>>, vector<2x4xf32>
    tpu.vector_store %arg6[%c0_5, %c0_6], %6 {strides = array<i32>} : memref<2x4xf32, #tpu.memory_space<vmem>>, vector<2x4xf32>,
    %c0_i32_7 = arith.constant 0 : i32
    %8 = arith.cmpi eq, %arg1, %c0_i32_7 : i32
    %9 = arith.extui %8 : i1 to i32
    %c0_i32_8 = arith.constant 0 : i32
    %10 = arith.cmpi ne, %9, %c0_i32_8 : i32
    scf.if %10 {
      %c0_9 = arith.constant 0 : index
      %c0_10 = arith.constant 0 : index
      %11 = vector.load %arg6[%c0_9, %c0_10] : memref<2x4xf32, #tpu.memory_space<vmem>>, vector<2x4xf32>
      %cst_11 = arith.constant 3.906250e-03 : f32
      %12 = vector.broadcast %cst_11 : f32 to vector<2x4xf32>
      %13 = arith.mulf %11, %12 : vector<2x4xf32>
      %c0_12 = arith.constant 0 : index
      %c0_13 = arith.constant 0 : index
      %14 = vector.load %arg3[%c0_12, %c0_13] : memref<2x4xf32, #tpu.memory_space<vmem>>, vector<2x4xf32>
      %c0_14 = arith.constant 0 : index
      %c0_15 = arith.constant 0 : index
      %15 = vector.load %arg4[%c0_14, %c0_15] : memref<4x2xf32, #tpu.memory_space<vmem>>, vector<4x2xf32>
      %16 = vector.shape_cast %13 : vector<2x4xf32> to vector<2x1x4xf32>
      %17 = vector.shape_cast %14 : vector<2x4xf32> to vector<1x2x4xf32>
      %18 = vector.broadcast %16 : vector<2x1x4xf32> to vector<2x2x4xf32>
      %19 = vector.broadcast %17 : vector<1x2x4xf32> to vector<2x2x4xf32>
      %20 = arith.mulf %18, %19 : vector<2x2x4xf32>
      %cst_16 = arith.constant dense<0.000000e+00> : vector<2x2xf32>
      %21 = vector.multi_reduction <add>, %20, %cst_16 [2] : vector<2x2x4xf32> to vector<2x2xf32>
      %cst_17 = arith.constant 0.000000e+00 : f32
      %22 = vector.broadcast %cst_17 : f32 to vector<2x2xf32>
      %23 = arith.maximumf %21, %22 : vector<2x2xf32>
      %24 = vector.shape_cast %23 : vector<2x2xf32> to vector<2x1x2xf32>
      %25 = vector.shape_cast %15 : vector<4x2xf32> to vector<1x4x2xf32>
      %26 = vector.broadcast %24 : vector<2x1x2xf32> to vector<2x4x2xf32>
      %27 = vector.broadcast %25 : vector<1x4x2xf32> to vector<2x4x2xf32>
      %28 = arith.mulf %26, %27 : vector<2x4x2xf32>
      %cst_18 = arith.constant dense<0.000000e+00> : vector<2x4xf32>
      %29 = vector.multi_reduction <add>, %28, %cst_18 [2] : vector<2x4x2xf32> to vector<2x4xf32>
      %30 = arith.negf %29 : vector<2x4xf32>
      %31 = math.exp %30 : vector<2x4xf32>
      %cst_19 = arith.constant 1.000000e+00 : f32
      %32 = vector.broadcast %cst_19 : f32 to vector<2x4xf32>
      %33 = arith.addf %32, %31 : vector<2x4xf32>
      %34 = arith.divf %32, %33 : vector<2x4xf32>
      %35 = vector.shape_cast %34 : vector<2x4xf32> to vector<2x4x1xf32>
      %c0_20 = arith.constant 0 : index
      %c0_21 = arith.constant 0 : index
      %c0_22 = arith.constant 0 : index
      %36 = vector.load %arg5[%c0_20, %c0_21, %c0_22] : memref<2x4x1xf32, #tpu.memory_space<vmem>>, vector<2x4x1xf32>
      tpu.vector_store %arg5[%c0_20, %c0_21, %c0_22], %35 {strides = array<i32>} : memref<2x4x1xf32, #tpu.memory_space<vmem>>, vector<2x4x1xf32>,
    } else {
    }
    return
  }
  func.func @transform_0(%arg0: i32, %arg1: i32) -> (i32, i32, i32) {
    %c0_i32 = arith.constant 0 : i32
    %c0_i32_0 = arith.constant 0 : i32
    return %arg0, %c0_i32, %arg1 : i32, i32, i32
  }
  func.func @transform_1(%arg0: i32, %arg1: i32) -> (i32, i32) {
    %c0_i32 = arith.constant 0 : i32
    %c0_i32_0 = arith.constant 0 : i32
    %c0_i32_1 = arith.constant 0 : i32
    return %c0_i32, %c0_i32_0 : i32, i32
  }
  func.func @transform_2(%arg0: i32, %arg1: i32) -> (i32, i32) {
    %c0_i32 = arith.constant 0 : i32
    %c0_i32_0 = arith.constant 0 : i32
    %c0_i32_1 = arith.constant 0 : i32
    return %c0_i32, %c0_i32_0 : i32, i32
  }
  func.func @transform_3(%arg0: i32, %arg1: i32) -> (i32, i32, i32) {
    %c0_i32 = arith.constant 0 : i32
    %c0_i32_0 = arith.constant 0 : i32
    %c0_i32_1 = arith.constant 0 : i32
    return %arg0, %c0_i32, %c0_i32_0 : i32, i32, i32
  }
}

</mosaic_0001>

<llo_original>
// kernel: tpu_custom_call.1
$region0: #{tpu_custom_call.1}
  #allocation0 [shape = 'u32[]', space=smem, size = 0x4, offset = 0x4, fixed_abs, tag = 'smem constant byte address 0x4 - core index']
  #allocation1 [shape = 'u32[72,128]{1,0:T(1,128)}', space=vmem, size = 0x9000, scoped, tag = 'internal scratch']
  #allocation2 [shape = 'f32[2,4]{1,0:T(2,128)}', space=vmem, size = 0x400, scoped, tag = 'scratch operand']
  %s0 = inlined_call_operand.hbm [shape: f32[2,4,256], index: 0, kind: input, shape index: {}]
  %s1 = inlined_call_operand.vmem [shape: f32[2,4], index: 1, kind: input, shape index: {}]
  %s2 = inlined_call_operand.vmem [shape: f32[4,2], index: 2, kind: input, shape index: {}]
  %s3 = inlined_call_operand.vmem [shape: f32[2,4,1], index: 3, kind: output, shape index: {}]
  %s4 = sld [smem:[#allocation0]]
  $region34: #{tpu_custom_call.1} parent=0
    _
  %s6 = ssub.s32 1, %s4
  %s7 = scalar_select 0, %s6, %s4
  $region1: #{tpu_custom_call.1} parent=0
    #allocation3 [shape = 'u8[8192]{0}', space=vmem, size = 0x2000, scoped, tag = 'input window, operand 0, single buffered']
    #allocation4 [shape = 's32[1]{0}', space=sflag, size = 0x4, scoped, tag = 'scoped memory for tpu_custom_call.1']
    %8 = vsyncpa [#allocation4], 0
    // Predicated region
    $region2: #{tpu_custom_call.1} parent=1 // pred_check
      _
    $region3: #{tpu_custom_call.1} parent=1 // pred_check_branch
      %10 = sbr.rel (0) target = $region5
    $region4: #{tpu_custom_call.1} parent=1 // pred_region
      %12 = vsyncadd [#allocation4], 0
      %s13 = sshll.u32 %s0, 4
      %s14 = int_to_ptr.hbm [resolvable:$true] %s13
      %s15 = sshll.u32 [#allocation3], 4
      %s16 = int_to_ptr.vmem [resolvable:$true] %s15
      %21 = dma.hbm_to_vmem [thread:$0]  %s14, 256, %s16, [#allocation4], 128, 128, 8
    $region5: #{tpu_custom_call.1} parent=1 // pred_fallthru
      _
    // Predicated region
    $region6: #{tpu_custom_call.1} parent=1 // pred_check
      _
    $region7: #{tpu_custom_call.1} parent=1 // pred_check_branch
      %23 = sbr.rel (0) target = $region9
    $region8: #{tpu_custom_call.1} parent=1 // pred_region
      _
    $region9: #{tpu_custom_call.1} parent=1 // pred_fallthru
      _
    // Predicated region
    $region10: #{tpu_custom_call.1} parent=1 // pred_check
      _
    $region11: #{tpu_custom_call.1} parent=1 // pred_check_branch
      %25 = sbr.rel (0) target = $region13
    $region12: #{tpu_custom_call.1} parent=1 // pred_region
      _
    $region13: #{tpu_custom_call.1} parent=1 // pred_fallthru
      _
    // Predicated region
    $region14: #{tpu_custom_call.1} parent=1 // pred_check
      _
    $region15: #{tpu_custom_call.1} parent=1 // pred_check_branch
      %27 = sbr.rel (0) target = $region17
    $region16: #{tpu_custom_call.1} parent=1 // pred_region
      %29 = dma.done [#allocation4], 256
    $region17: #{tpu_custom_call.1} parent=1 // pred_fallthru
      _
    %p30 = scmp.eq.s32.totalorder 0, 0
    // Predicated region
    $region18: #{tpu_custom_call.1} parent=1 // pred_check
      %p31 = pneg %p30
    $region19: #{tpu_custom_call.1} parent=1 // pred_check_branch
      %33 = sbr.rel (%p31) target = $region21
    $region20: #{tpu_custom_call.1} parent=1 // pred_region
      %vm34 = vcmask 25600
      %35 = vst.msk [vmem:[#allocation2] sm:$0x3] %vm34, 0.0
    $region21: #{tpu_custom_call.1} parent=1 // pred_fallthru
      _
    %v36 = vld [vmem:[#allocation2] sm:$0x3]
    %v37 = vld [vmem:[#allocation3] sm:$0xff]
    %v38 = vld [vmem:[#allocation3 + $0x8] sm:$0xff]
    %41 = vst [vmem:[#allocation1] ss:$2 sm:$0xff] %v37
    %v42 = vld.sshfl [vmem:[#allocation1] sm:$0xff pattern:$0x75316420]
    %v43 = vld.sshfl [vmem:[#allocation1 + $0x8] sm:$0xff pattern:$0x75316420]
    %s44 = scalar_lea.vmem [#allocation1], 16
    %45 = vst [vmem:[%s44] ss:$2 sm:$0xff] %v38
    %v46 = vld.sshfl [vmem:[#allocation1 + $0x10] sm:$0xff pattern:$0x75316420]
    %v47 = vld.sshfl [vmem:[#allocation1 + $0x18] sm:$0xff pattern:$0x75316420]
    %vm52 = vcmask 1043456
    %v53 = vsel %vm52, %v42, 0.0
    %v54 = vsel %vm52, %v43, 0.0
    %v55 = vadd.f32 %v53, %v54
    %56 = vadd.xlane.f32.xlu0 %v55
    %v57 = vpop.xlane.xlu0 %56
    %v58 = vsel %vm52, %v46, 0.0
    %v59 = vsel %vm52, %v47, 0.0
    %v60 = vadd.f32 %v58, %v59
    %61 = vadd.xlane.f32.xlu0 %v60
    %v62 = vpop.xlane.xlu0 %61
    %v65 = vlaneseq
    %v66 = vand.u32 %v65, 127
    %v67 = vperm.slane %v57, %v66
    %v68 = vperm.slane %v62, %v66
    %vm69 = vcmask 1041409
    %v70 = vsel %vm69, %v68, %v67
    %v72 = vadd.f32 %v36, %v70
    %vm73 = vcmask 25600
    %74 = vst.msk [vmem:[#allocation2] sm:$0x3] %vm73, %v72
    // Predicated region
    $region22: #{tpu_custom_call.1} parent=1 // pred_check
      %p75 = pneg %p30
    $region23: #{tpu_custom_call.1} parent=1 // pred_check_branch
      %77 = sbr.rel (%p75) target = $region25
    $region24: #{tpu_custom_call.1} parent=1 // pred_region
      %v78 = vld [vmem:[#allocation2] sm:$0x3]
      %v79 = vmul.f32 %v78, 0.00390625
      %v80 = vld [vmem:[%s1] sm:$0x3]
      %v81 = vld [vmem:[%s2] sm:$0xf]
      %v83 = vrot.slane %v79, 1
      %v84 = vperm.slane %v79, 0
      %v85 = vperm.slane %v83, 0
      %v88 = vmul.f32 %v84, %v80
      %v89 = vmul.f32 %v85, %v80
      %v90 = vsel %vm73, %v88, 0.0
      %91 = vadd.xlane.f32.xlu0 %v90
      %v92 = vpop.xlane.xlu0 %91
      %v93 = vsel %vm73, %v89, 0.0
      %94 = vadd.xlane.f32.xlu0 %v93
      %v95 = vpop.xlane.xlu0 %94
      %v96 = vmax.f32 %v92, 0.0
      %v97 = vmax.f32 %v95, 0.0
      %v99 = vperm.slane %v81, 0
      %v100 = vlaneseq
      %v101 = vshrl.u32 %v100, 7
      %103 = vset.pattern.permute.xlu0 %v101
      %104 = vperm.xlu0 %103, %v99
      %v105 = vpop.permute.xlu0 %104
      %v106 = vperm.slane %v81, 1
      %v107 = vlaneseq
      %v108 = vshrl.u32 %v107, 7
      %110 = vset.pattern.permute.xlu0 %v108
      %111 = vperm.xlu0 %110, %v106
      %v112 = vpop.permute.xlu0 %111
      %v113 = vperm.slane %v81, 2
      %v114 = vlaneseq
      %v115 = vshrl.u32 %v114, 7
      %117 = vset.pattern.permute.xlu0 %v115
      %118 = vperm.xlu0 %117, %v113
      %v119 = vpop.permute.xlu0 %118
      %v120 = vperm.slane %v81, 3
      %v121 = vlaneseq
      %v122 = vshrl.u32 %v121, 7
      %124 = vset.pattern.permute.xlu0 %v122
      %125 = vperm.xlu0 %124, %v120
      %v126 = vpop.permute.xlu0 %125
      %v131 = vmul.f32 %v96, %v105
      %v132 = vmul.f32 %v96, %v112
      %v133 = vmul.f32 %v96, %v119
      %v134 = vmul.f32 %v96, %v126
      %v135 = vmul.f32 %v97, %v105
      %v136 = vmul.f32 %v97, %v112
      %v137 = vmul.f32 %v97, %v119
      %v138 = vmul.f32 %v97, %v126
      %147 = vset.pattern.permute.xlu0 0
      %148 = vperm.xlu0 %147, %v131
      %v149 = vpop.permute.xlu0 %148
      %150 = vset.pattern.permute.xlu0 0
      %151 = vperm.xlu0 %150, %v132
      %v152 = vpop.permute.xlu0 %151
      %153 = vset.pattern.permute.xlu0 0
      %154 = vperm.xlu0 %153, %v133
      %v155 = vpop.permute.xlu0 %154
      %156 = vset.pattern.permute.xlu0 0
      %157 = vperm.xlu0 %156, %v134
      %v158 = vpop.permute.xlu0 %157
      %159 = vset.pattern.permute.xlu0 0
      %160 = vperm.xlu0 %159, %v135
      %v161 = vpop.permute.xlu0 %160
      %162 = vset.pattern.permute.xlu0 0
      %163 = vperm.xlu0 %162, %v136
      %v164 = vpop.permute.xlu0 %163
      %165 = vset.pattern.permute.xlu0 0
      %166 = vperm.xlu0 %165, %v137
      %v167 = vpop.permute.xlu0 %166
      %168 = vset.pattern.permute.xlu0 0
      %169 = vperm.xlu0 %168, %v138
      %v170 = vpop.permute.xlu0 %169
      %v171 = vperm.slane %v149, %v66
      %v172 = vperm.slane %v152, %v66
      %v173 = vperm.slane %v155, %v66
      %v174 = vperm.slane %v158, %v66
      %v175 = vperm.slane %v161, %v66
      %v176 = vperm.slane %v164, %v66
      %v177 = vperm.slane %v167, %v66
      %v178 = vperm.slane %v170, %v66
      %v179 = vsel %vm69, %v172, %v171
      %vm180 = vcmask 1042434
      %v181 = vsel %vm180, %v173, %v179
      %vm182 = vcmask 1043459
      %v183 = vsel %vm182, %v174, %v181
      %v184 = vsel %vm69, %v176, %v175
      %v185 = vsel %vm180, %v177, %v184
      %v186 = vsel %vm182, %v178, %v185
      %vm189 = vcmask 11264
      %v190 = vsel %vm189, %v183, 0.0
      %191 = vadd.xlane.f32.xlu0 %v190
      %v192 = vpop.xlane.xlu0 %191
      %v193 = vsel %vm189, %v186, 0.0
      %194 = vadd.xlane.f32.xlu0 %v193
      %v195 = vpop.xlane.xlu0 %194
      %v196 = vxor.u32 %v192, 2147483648
      %v197 = vxor.u32 %v195, 2147483648
      %v198 = vmul.f32 %v196, 1.442695
      %v199 = vpow.pop %v198
      %v200 = vmul.f32 %v197, 1.442695
      %v201 = vpow.pop %v200
      %v202 = vadd.f32 %v199, 1.0
      %v203 = vadd.f32 %v201, 1.0
      %v204 = vrcp.pop %v202
      %v205 = vmul.f32 %v202, %v204
      %v206 = vsub.f32 1.0, %v205
      %v207 = vmul.f32 %v204, %v206
      %v208 = vadd.f32 %v204, %v207
      %vm209 = vweird.f32 %v202
      %vm210 = vweird.f32 %v204
      %vm211 = vmor %vm209, %vm210
      %v212 = vsel %vm211, %v204, %v208
      %v213 = vand.u32 2147483647, %v202
      %vm214 = vcmp.eq.f32.partialorder %v213, 8.507059e+37
      %v215 = vand.u32 %v202, 2147483648
      %v216 = vor.u32 1.1754944e-38, %v215
      %v217 = vsel %vm214, %v216, %v212
      %v218 = vmul.f32 1.0, %v217
      %v219 = vrcp.pop %v203
      %v220 = vmul.f32 %v203, %v219
      %v221 = vsub.f32 1.0, %v220
      %v222 = vmul.f32 %v219, %v221
      %v223 = vadd.f32 %v219, %v222
      %vm224 = vweird.f32 %v203
      %vm225 = vweird.f32 %v219
      %vm226 = vmor %vm224, %vm225
      %v227 = vsel %vm226, %v219, %v223
      %v228 = vand.u32 2147483647, %v203
      %vm229 = vcmp.eq.f32.partialorder %v228, 8.507059e+37
      %v230 = vand.u32 %v203, 2147483648
      %v231 = vor.u32 1.1754944e-38, %v230
      %v232 = vsel %vm229, %v231, %v227
      %v233 = vmul.f32 1.0, %v232
      %vm234 = vcmask 3072
      %235 = vst.msk [vmem:[%s3] sm:$0xf] %vm234, %v218
      %236 = vst.msk [vmem:[%s3 + $0x4] sm:$0xf] %vm234, %v233
    $region25: #{tpu_custom_call.1} parent=1 // pred_fallthru
      _
    // Predicated region
    $region26: #{tpu_custom_call.1} parent=1 // pred_check
      _
    $region27: #{tpu_custom_call.1} parent=1 // pred_check_branch
      %238 = sbr.rel (0) target = $region29
    $region28: #{tpu_custom_call.1} parent=1 // pred_region
      _
    $region29: #{tpu_custom_call.1} parent=1 // pred_fallthru
      _
    // Predicated region
    $region30: #{tpu_custom_call.1} parent=1 // pred_check
      _
    $region31: #{tpu_custom_call.1} parent=1 // pred_check_branch
      %240 = sbr.rel (0) target = $region33
    $region32: #{tpu_custom_call.1} parent=1 // pred_region
      _
    $region33: #{tpu_custom_call.1} parent=1 // pred_fallthru
      _
    %241 = vsyncpa [#allocation4], 1

</llo_original>
